<compile_context>
chip_gen: v5e
topology: v5e:2x2
jax: 0.10.0
libtpu: 0.0.40
codegen_flags: <defaults>
</compile_context>

<pallas_src>
import jax
import jax.numpy as jnp
from jax import lax
from jax.experimental import pallas as pl
from jax.experimental.pallas import tpu as pltpu

STATE_SIZE = 32
ACTION_SIZE = 8
H1, H2 = 256, 128
NUM_HEADS = 4
HEAD_DIM = H2 // NUM_HEADS
BN_EPS = 1e-5
LN_EPS = 1e-5


def policy_kernel(x_ref,
                  w1_ref, b1_ref, g1_ref, be1_ref,
                  w2_ref, b2_ref, g2_ref, be2_ref,
                  wvo_ref, bvo_ref,
                  lng_ref, lnb_ref,
                  wh_ref, bh_ref,
                  out_ref):
    x = x_ref[...].astype(jnp.bfloat16)

    # ---- fc1 (bf16 MXU, f32 acc) + BatchNorm1d(batch stats, folded) + relu ----
    h = jnp.dot(x, w1_ref[...], preferred_element_type=jnp.float32) + b1_ref[...]
    mu = jnp.mean(h, axis=0, keepdims=True)
    var = jnp.mean((h - mu) ** 2, axis=0, keepdims=True)        # biased var (torch BN)
    scale = g1_ref[...] * lax.rsqrt(var + BN_EPS)
    shift = be1_ref[...] - mu * scale
    h = jnp.maximum(h * scale + shift, 0.0)

    # ---- fc2 + BatchNorm1d + relu ----
    h = jnp.dot(h.astype(jnp.bfloat16), w2_ref[...],
                preferred_element_type=jnp.float32) + b2_ref[...]
    mu = jnp.mean(h, axis=0, keepdims=True)
    var = jnp.mean((h - mu) ** 2, axis=0, keepdims=True)
    scale = g2_ref[...] * lax.rsqrt(var + BN_EPS)
    shift = be2_ref[...] - mu * scale
    h = jnp.maximum(h * scale + shift, 0.0)

    # ---- AttentionModule (seq_len == 1) ----
    # softmax over a length-1 key axis is exactly 1 for every head, so the
    # context equals the value projection; value->output_linear is a pure
    # linear chain pre-folded in the wrapper to a single (128,128) matmul.
    # TODO(synk): dropout on attention weights omitted (identity at eval).
    attn = jnp.dot(h.astype(jnp.bfloat16), wvo_ref[...],
                   preferred_element_type=jnp.float32) + bvo_ref[...]

    # residual (exact f32 add) + LayerNorm over the feature dim
    y = h + attn
    lmu = jnp.mean(y, axis=-1, keepdims=True)
    lvar = jnp.mean((y - lmu) ** 2, axis=-1, keepdims=True)
    y = (y - lmu) * lax.rsqrt(lvar + LN_EPS) * lng_ref[...] + lnb_ref[...]

    # ---- fused output heads: one (128, 16) matmul, one store ----
    z = jnp.dot(y.astype(jnp.bfloat16), wh_ref[...],
                preferred_element_type=jnp.float32) + bh_ref[...]
    col = lax.broadcasted_iota(jnp.int32, z.shape, dimension=1)
    out_ref[...] = jnp.where(col >= ACTION_SIZE, jnp.clip(z, -20.0, 2.0), z)


def init_raw_params(key, state_size=STATE_SIZE, action_size=ACTION_SIZE):
    """Deterministic synthetic parameters in the module's natural form (f32)."""
    ks = jax.random.split(key, 6)

    def lin(k, fan_in, fan_out):
        w = 0.05 * jax.random.normal(k, (fan_in, fan_out), jnp.float32)
        b = jnp.zeros((1, fan_out), jnp.float32)
        return w, b

    w1, b1 = lin(ks[0], state_size, H1)
    w2, b2 = lin(ks[1], H1, H2)
    wv, bv = lin(ks[2], H2, H2)
    wo, bo = lin(ks[3], H2, H2)
    wm, bm = lin(ks[4], H2, action_size)
    wl, bl = lin(ks[5], H2, action_size)

    return dict(
        w1=w1, b1=b1, g1=jnp.ones((1, H1), jnp.float32), be1=jnp.zeros((1, H1), jnp.float32),
        w2=w2, b2=b2, g2=jnp.ones((1, H2), jnp.float32), be2=jnp.zeros((1, H2), jnp.float32),
        wv=wv, bv=bv, wo=wo, bo=bo,
        lng=jnp.ones((1, H2), jnp.float32), lnb=jnp.zeros((1, H2), jnp.float32),
        wm=wm, bm=bm, wl=wl, bl=bl,
    )


def prepare_params(p):
    """Algebraic pre-folding + bf16 weight cast (done once, outside the kernel)."""
    # value -> output_linear fold (exact because seq_len==1 softmax == 1)
    wvo = p["wv"] @ p["wo"]                      # (H2, H2), f32 precompute
    bvo = p["bv"] @ p["wo"] + p["bo"]            # (1, H2)
    # fused mean / log_std heads
    wh = jnp.concatenate([p["wm"], p["wl"]], axis=1)   # (H2, 2*ACTION_SIZE)
    bh = jnp.concatenate([p["bm"], p["bl"]], axis=1)   # (1, 2*ACTION_SIZE)

    bf16 = lambda a: a.astype(jnp.bfloat16)
    return (bf16(p["w1"]), p["b1"], p["g1"], p["be1"],
            bf16(p["w2"]), p["b2"], p["g2"], p["be2"],
            bf16(wvo), bvo,
            p["lng"], p["lnb"],
            bf16(wh), bh)


def policy_forward(x, params):
    batch = x.shape[0]
    # batch-stat BatchNorm path of the module requires batch > 1
    assert batch > 1, "PolicyNetwork BN(batch stats) path requires batch > 1"

    args = (x,) + tuple(params)
    vmem = pl.BlockSpec(memory_space=pltpu.MemorySpace.VMEM)

    flops = 2 * batch * (STATE_SIZE * H1 + H1 * H2 + H2 * H2 + H2 * 2 * ACTION_SIZE)
    bytes_accessed = (sum(int(a.size) * a.dtype.itemsize for a in args)
                      + batch * 2 * ACTION_SIZE * 4)

    out = pl.pallas_call(
        policy_kernel,
        out_shape=jax.ShapeDtypeStruct((batch, 2 * ACTION_SIZE), jnp.float32),
        in_specs=[vmem] * len(args),
        out_specs=vmem,
        cost_estimate=pl.CostEstimate(
            flops=flops, transcendentals=0, bytes_accessed=bytes_accessed),
    )(*args)

    mean = out[:, :ACTION_SIZE]
    log_std = out[:, ACTION_SIZE:]
    return mean, log_std


if __name__ == "__main__":
    key = jax.random.PRNGKey(0)
    pkey, xkey = jax.random.split(key)

    raw = init_raw_params(pkey)
    params = prepare_params(raw)

    batch = 8                                    # > 1 so the BatchNorm path is taken
    x = jax.random.normal(xkey, (batch, STATE_SIZE), jnp.float32)

    mean, log_std = jax.jit(policy_forward)(x, params)
    jax.block_until_ready((mean, log_std))

    assert mean.shape == (batch, ACTION_SIZE)
    assert log_std.shape == (batch, ACTION_SIZE)
    assert bool(jnp.all(log_std >= -20.0)) and bool(jnp.all(log_std <= 2.0))
    print("KERNEL_OK")
</pallas_src>

<mosaic_0001>
module attributes {stable_mosaic.version = 11 : i64} {
  func.func @policy_kernel(%arg0: memref<8x32xf32, #tpu.memory_space<vmem>>, %arg1: memref<32x256xbf16, #tpu.memory_space<vmem>>, %arg2: memref<1x256xf32, #tpu.memory_space<vmem>>, %arg3: memref<1x256xf32, #tpu.memory_space<vmem>>, %arg4: memref<1x256xf32, #tpu.memory_space<vmem>>, %arg5: memref<256x128xbf16, #tpu.memory_space<vmem>>, %arg6: memref<1x128xf32, #tpu.memory_space<vmem>>, %arg7: memref<1x128xf32, #tpu.memory_space<vmem>>, %arg8: memref<1x128xf32, #tpu.memory_space<vmem>>, %arg9: memref<128x128xbf16, #tpu.memory_space<vmem>>, %arg10: memref<1x128xf32, #tpu.memory_space<vmem>>, %arg11: memref<1x128xf32, #tpu.memory_space<vmem>>, %arg12: memref<1x128xf32, #tpu.memory_space<vmem>>, %arg13: memref<128x16xbf16, #tpu.memory_space<vmem>>, %arg14: memref<1x16xf32, #tpu.memory_space<vmem>>, %arg15: memref<8x16xf32, #tpu.memory_space<vmem>>) attributes {dimension_semantics = [], scalar_prefetch = 0 : i64, scratch_operands = 0 : i64, tpu.core_type = #tpu.core_type<tc>} {
    %c0 = arith.constant 0 : index
    %c0_0 = arith.constant 0 : index
    %0 = vector.load %arg0[%c0, %c0_0] : memref<8x32xf32, #tpu.memory_space<vmem>>, vector<8x32xf32>
    %1 = arith.truncf %0 : vector<8x32xf32> to vector<8x32xbf16>
    %c0_1 = arith.constant 0 : index
    %c0_2 = arith.constant 0 : index
    %2 = vector.load %arg1[%c0_1, %c0_2] : memref<32x256xbf16, #tpu.memory_space<vmem>>, vector<32x256xbf16>
    %cst = arith.constant dense<0.000000e+00> : vector<8x256xf32>
    %3 = tpu.matmul %1, %2, %cst {dimension_numbers = #tpu.dot_dimension_numbers<[1], [0], [0], [1], [0, 0, 1, 1], [], []>} : vector<8x32xbf16>, vector<32x256xbf16>, vector<8x256xf32> -> vector<8x256xf32>
    %c0_3 = arith.constant 0 : index
    %c0_4 = arith.constant 0 : index
    %4 = vector.load %arg2[%c0_3, %c0_4] : memref<1x256xf32, #tpu.memory_space<vmem>>, vector<1x256xf32>
    %5 = vector.broadcast %4 : vector<1x256xf32> to vector<8x256xf32>
    %6 = arith.addf %3, %5 : vector<8x256xf32>
    %cst_5 = arith.constant dense<0.000000e+00> : vector<256xf32>
    %7 = vector.multi_reduction <add>, %6, %cst_5 [0] : vector<8x256xf32> to vector<256xf32>
    %8 = vector.shape_cast %7 : vector<256xf32> to vector<1x256xf32>
    %cst_6 = arith.constant 8.000000e+00 : f32
    %9 = vector.broadcast %cst_6 : f32 to vector<1x256xf32>
    %10 = arith.divf %8, %9 : vector<1x256xf32>
    %11 = vector.broadcast %10 : vector<1x256xf32> to vector<8x256xf32>
    %12 = arith.subf %6, %11 : vector<8x256xf32>
    %13 = arith.mulf %12, %12 : vector<8x256xf32>
    %cst_7 = arith.constant dense<0.000000e+00> : vector<256xf32>
    %14 = vector.multi_reduction <add>, %13, %cst_7 [0] : vector<8x256xf32> to vector<256xf32>
    %15 = vector.shape_cast %14 : vector<256xf32> to vector<1x256xf32>
    %cst_8 = arith.constant 8.000000e+00 : f32
    %16 = vector.broadcast %cst_8 : f32 to vector<1x256xf32>
    %17 = arith.divf %15, %16 : vector<1x256xf32>
    %c0_9 = arith.constant 0 : index
    %c0_10 = arith.constant 0 : index
    %18 = vector.load %arg3[%c0_9, %c0_10] : memref<1x256xf32, #tpu.memory_space<vmem>>, vector<1x256xf32>
    %cst_11 = arith.constant 9.99999974E-6 : f32
    %19 = vector.broadcast %cst_11 : f32 to vector<1x256xf32>
    %20 = arith.addf %17, %19 : vector<1x256xf32>
    %21 = math.rsqrt %20 : vector<1x256xf32>
    %22 = arith.mulf %18, %21 : vector<1x256xf32>
    %c0_12 = arith.constant 0 : index
    %c0_13 = arith.constant 0 : index
    %23 = vector.load %arg4[%c0_12, %c0_13] : memref<1x256xf32, #tpu.memory_space<vmem>>, vector<1x256xf32>
    %24 = arith.mulf %10, %22 : vector<1x256xf32>
    %25 = arith.subf %23, %24 : vector<1x256xf32>
    %26 = vector.broadcast %22 : vector<1x256xf32> to vector<8x256xf32>
    %27 = arith.mulf %6, %26 : vector<8x256xf32>
    %28 = vector.broadcast %25 : vector<1x256xf32> to vector<8x256xf32>
    %29 = arith.addf %27, %28 : vector<8x256xf32>
    %cst_14 = arith.constant 0.000000e+00 : f32
    %30 = vector.broadcast %cst_14 : f32 to vector<8x256xf32>
    %31 = arith.maximumf %29, %30 : vector<8x256xf32>
    %32 = arith.truncf %31 : vector<8x256xf32> to vector<8x256xbf16>
    %c0_15 = arith.constant 0 : index
    %c0_16 = arith.constant 0 : index
    %33 = vector.load %arg5[%c0_15, %c0_16] : memref<256x128xbf16, #tpu.memory_space<vmem>>, vector<256x128xbf16>
    %cst_17 = arith.constant dense<0.000000e+00> : vector<8x128xf32>
    %34 = tpu.matmul %32, %33, %cst_17 {dimension_numbers = #tpu.dot_dimension_numbers<[1], [0], [0], [1], [0, 0, 1, 1], [], []>} : vector<8x256xbf16>, vector<256x128xbf16>, vector<8x128xf32> -> vector<8x128xf32>
    %c0_18 = arith.constant 0 : index
    %c0_19 = arith.constant 0 : index
    %35 = vector.load %arg6[%c0_18, %c0_19] : memref<1x128xf32, #tpu.memory_space<vmem>>, vector<1x128xf32>
    %36 = vector.broadcast %35 : vector<1x128xf32> to vector<8x128xf32>
    %37 = arith.addf %34, %36 : vector<8x128xf32>
    %cst_20 = arith.constant dense<0.000000e+00> : vector<128xf32>
    %38 = vector.multi_reduction <add>, %37, %cst_20 [0] : vector<8x128xf32> to vector<128xf32>
    %39 = vector.shape_cast %38 : vector<128xf32> to vector<1x128xf32>
    %cst_21 = arith.constant 8.000000e+00 : f32
    %40 = vector.broadcast %cst_21 : f32 to vector<1x128xf32>
    %41 = arith.divf %39, %40 : vector<1x128xf32>
    %42 = vector.broadcast %41 : vector<1x128xf32> to vector<8x128xf32>
    %43 = arith.subf %37, %42 : vector<8x128xf32>
    %44 = arith.mulf %43, %43 : vector<8x128xf32>
    %cst_22 = arith.constant dense<0.000000e+00> : vector<128xf32>
    %45 = vector.multi_reduction <add>, %44, %cst_22 [0] : vector<8x128xf32> to vector<128xf32>
    %46 = vector.shape_cast %45 : vector<128xf32> to vector<1x128xf32>
    %cst_23 = arith.constant 8.000000e+00 : f32
    %47 = vector.broadcast %cst_23 : f32 to vector<1x128xf32>
    %48 = arith.divf %46, %47 : vector<1x128xf32>
    %c0_24 = arith.constant 0 : index
    %c0_25 = arith.constant 0 : index
    %49 = vector.load %arg7[%c0_24, %c0_25] : memref<1x128xf32, #tpu.memory_space<vmem>>, vector<1x128xf32>
    %cst_26 = arith.constant 9.99999974E-6 : f32
    %50 = vector.broadcast %cst_26 : f32 to vector<1x128xf32>
    %51 = arith.addf %48, %50 : vector<1x128xf32>
    %52 = math.rsqrt %51 : vector<1x128xf32>
    %53 = arith.mulf %49, %52 : vector<1x128xf32>
    %c0_27 = arith.constant 0 : index
    %c0_28 = arith.constant 0 : index
    %54 = vector.load %arg8[%c0_27, %c0_28] : memref<1x128xf32, #tpu.memory_space<vmem>>, vector<1x128xf32>
    %55 = arith.mulf %41, %53 : vector<1x128xf32>
    %56 = arith.subf %54, %55 : vector<1x128xf32>
    %57 = vector.broadcast %53 : vector<1x128xf32> to vector<8x128xf32>
    %58 = arith.mulf %37, %57 : vector<8x128xf32>
    %59 = vector.broadcast %56 : vector<1x128xf32> to vector<8x128xf32>
    %60 = arith.addf %58, %59 : vector<8x128xf32>
    %cst_29 = arith.constant 0.000000e+00 : f32
    %61 = vector.broadcast %cst_29 : f32 to vector<8x128xf32>
    %62 = arith.maximumf %60, %61 : vector<8x128xf32>
    %63 = arith.truncf %62 : vector<8x128xf32> to vector<8x128xbf16>
    %c0_30 = arith.constant 0 : index
    %c0_31 = arith.constant 0 : index
    %64 = vector.load %arg9[%c0_30, %c0_31] : memref<128x128xbf16, #tpu.memory_space<vmem>>, vector<128x128xbf16>
    %cst_32 = arith.constant dense<0.000000e+00> : vector<8x128xf32>
    %65 = tpu.matmul %63, %64, %cst_32 {dimension_numbers = #tpu.dot_dimension_numbers<[1], [0], [0], [1], [0, 0, 1, 1], [], []>} : vector<8x128xbf16>, vector<128x128xbf16>, vector<8x128xf32> -> vector<8x128xf32>
    %c0_33 = arith.constant 0 : index
    %c0_34 = arith.constant 0 : index
    %66 = vector.load %arg10[%c0_33, %c0_34] : memref<1x128xf32, #tpu.memory_space<vmem>>, vector<1x128xf32>
    %67 = vector.broadcast %66 : vector<1x128xf32> to vector<8x128xf32>
    %68 = arith.addf %65, %67 : vector<8x128xf32>
    %69 = arith.addf %62, %68 : vector<8x128xf32>
    %cst_35 = arith.constant dense<0.000000e+00> : vector<8xf32>
    %70 = vector.multi_reduction <add>, %69, %cst_35 [1] : vector<8x128xf32> to vector<8xf32>
    %71 = vector.shape_cast %70 : vector<8xf32> to vector<8x1xf32>
    %cst_36 = arith.constant 1.280000e+02 : f32
    %72 = vector.broadcast %cst_36 : f32 to vector<8x1xf32>
    %73 = arith.divf %71, %72 : vector<8x1xf32>
    %74 = vector.broadcast %73 : vector<8x1xf32> to vector<8x128xf32>
    %75 = arith.subf %69, %74 : vector<8x128xf32>
    %76 = arith.mulf %75, %75 : vector<8x128xf32>
    %cst_37 = arith.constant dense<0.000000e+00> : vector<8xf32>
    %77 = vector.multi_reduction <add>, %76, %cst_37 [1] : vector<8x128xf32> to vector<8xf32>
    %78 = vector.shape_cast %77 : vector<8xf32> to vector<8x1xf32>
    %cst_38 = arith.constant 1.280000e+02 : f32
    %79 = vector.broadcast %cst_38 : f32 to vector<8x1xf32>
    %80 = arith.divf %78, %79 : vector<8x1xf32>
    %81 = vector.broadcast %73 : vector<8x1xf32> to vector<8x128xf32>
    %82 = arith.subf %69, %81 : vector<8x128xf32>
    %cst_39 = arith.constant 9.99999974E-6 : f32
    %83 = vector.broadcast %cst_39 : f32 to vector<8x1xf32>
    %84 = arith.addf %80, %83 : vector<8x1xf32>
    %85 = math.rsqrt %84 : vector<8x1xf32>
    %86 = vector.broadcast %85 : vector<8x1xf32> to vector<8x128xf32>
    %87 = arith.mulf %82, %86 : vector<8x128xf32>
    %c0_40 = arith.constant 0 : index
    %c0_41 = arith.constant 0 : index
    %88 = vector.load %arg11[%c0_40, %c0_41] : memref<1x128xf32, #tpu.memory_space<vmem>>, vector<1x128xf32>
    %89 = vector.broadcast %88 : vector<1x128xf32> to vector<8x128xf32>
    %90 = arith.mulf %87, %89 : vector<8x128xf32>
    %c0_42 = arith.constant 0 : index
    %c0_43 = arith.constant 0 : index
    %91 = vector.load %arg12[%c0_42, %c0_43] : memref<1x128xf32, #tpu.memory_space<vmem>>, vector<1x128xf32>
    %92 = vector.broadcast %91 : vector<1x128xf32> to vector<8x128xf32>
    %93 = arith.addf %90, %92 : vector<8x128xf32>
    %94 = arith.truncf %93 : vector<8x128xf32> to vector<8x128xbf16>
    %c0_44 = arith.constant 0 : index
    %c0_45 = arith.constant 0 : index
    %95 = vector.load %arg13[%c0_44, %c0_45] : memref<128x16xbf16, #tpu.memory_space<vmem>>, vector<128x16xbf16>
    %cst_46 = arith.constant dense<0.000000e+00> : vector<8x16xf32>
    %96 = tpu.matmul %94, %95, %cst_46 {dimension_numbers = #tpu.dot_dimension_numbers<[1], [0], [0], [1], [0, 0, 1, 1], [], []>} : vector<8x128xbf16>, vector<128x16xbf16>, vector<8x16xf32> -> vector<8x16xf32>
    %c0_47 = arith.constant 0 : index
    %c0_48 = arith.constant 0 : index
    %97 = vector.load %arg14[%c0_47, %c0_48] : memref<1x16xf32, #tpu.memory_space<vmem>>, vector<1x16xf32>
    %98 = vector.broadcast %97 : vector<1x16xf32> to vector<8x16xf32>
    %99 = arith.addf %96, %98 : vector<8x16xf32>
    %100 = tpu.iota {dimensions = array<i32: 1>} : vector<8x16xi32>
    %c8_i32 = arith.constant 8 : i32
    %101 = vector.broadcast %c8_i32 : i32 to vector<8x16xi32>
    %102 = arith.cmpi sge, %100, %101 : vector<8x16xi32>
    %cst_49 = arith.constant -2.000000e+01 : f32
    %cst_50 = arith.constant 2.000000e+00 : f32
    %103 = vector.broadcast %cst_49 : f32 to vector<8x16xf32>
    %104 = arith.maximumf %103, %99 : vector<8x16xf32>
    %105 = vector.broadcast %cst_50 : f32 to vector<8x16xf32>
    %106 = arith.minimumf %105, %104 : vector<8x16xf32>
    %107 = arith.select %102, %106, %99 : vector<8x16xi1>, vector<8x16xf32>
    %c0_51 = arith.constant 0 : index
    %c0_52 = arith.constant 0 : index
    %108 = vector.load %arg15[%c0_51, %c0_52] : memref<8x16xf32, #tpu.memory_space<vmem>>, vector<8x16xf32>
    tpu.vector_store %arg15[%c0_51, %c0_52], %107 {strides = array<i32>} : memref<8x16xf32, #tpu.memory_space<vmem>>, vector<8x16xf32>,
    return
  }
}

</mosaic_0001>

<llo_original>
// kernel: policy_forward.1
$region0: #{policy_forward.1}
  #allocation0 [shape = 'u32[]', space=smem, size = 0x4, offset = 0x4, fixed_abs, tag = 'smem constant byte address 0x4 - core index']
  #allocation1 [shape = 'u32[72,128]{1,0:T(1,128)}', space=vmem, size = 0x9000, scoped, tag = 'internal scratch']
  %s0 = inlined_call_operand.vmem [shape: f32[8,32], index: 0, kind: input, shape index: {}]
  %s1 = inlined_call_operand.hbm [shape: bf16[32,256], index: 1, kind: input, shape index: {}]
  %s2 = inlined_call_operand.vmem [shape: f32[1,256], index: 2, kind: input, shape index: {}]
  %s3 = inlined_call_operand.vmem [shape: f32[1,256], index: 3, kind: input, shape index: {}]
  %s4 = inlined_call_operand.hbm [shape: f32[1,256], index: 4, kind: input, shape index: {}]
  %s5 = inlined_call_operand.hbm [shape: bf16[256,128], index: 5, kind: input, shape index: {}]
  %s6 = inlined_call_operand.hbm [shape: f32[1,128], index: 6, kind: input, shape index: {}]
  %s7 = inlined_call_operand.hbm [shape: f32[1,128], index: 7, kind: input, shape index: {}]
  %s8 = inlined_call_operand.hbm [shape: f32[1,128], index: 8, kind: input, shape index: {}]
  %s9 = inlined_call_operand.vmem [shape: bf16[128,128], index: 9, kind: input, shape index: {}]
  %s10 = inlined_call_operand.hbm [shape: f32[1,128], index: 10, kind: input, shape index: {}]
  %s11 = inlined_call_operand.hbm [shape: f32[1,128], index: 11, kind: input, shape index: {}]
  %s12 = inlined_call_operand.hbm [shape: f32[1,128], index: 12, kind: input, shape index: {}]
  %s13 = inlined_call_operand.vmem [shape: bf16[128,16], index: 13, kind: input, shape index: {}]
  %s14 = inlined_call_operand.vmem [shape: f32[1,16], index: 14, kind: input, shape index: {}]
  %s15 = inlined_call_operand.vmem [shape: f32[8,16], index: 15, kind: output, shape index: {}]
  %s16 = sld [smem:[#allocation0]]
  $region106: #{policy_forward.1} parent=0
    _
  %s18 = ssub.s32 1, %s16
  %s19 = scalar_select 0, %s18, %s16
  $region1: #{policy_forward.1} parent=0
    #allocation2 [shape = 'u8[16384]{0}', space=vmem, size = 0x4000, scoped, tag = 'input window, operand 1, single buffered']
    #allocation3 [shape = 's32[1]{0}', space=sflag, size = 0x4, scoped, tag = 'scoped memory for policy_forward.1']
    #allocation4 [shape = 'u8[1024]{0}', space=vmem, size = 0x400, scoped, tag = 'input window, operand 4, single buffered']
    #allocation5 [shape = 's32[1]{0}', space=sflag, size = 0x4, scoped, tag = 'scoped memory for policy_forward.1']
    #allocation6 [shape = 'u8[65536]{0}', space=vmem, size = 0x10000, scoped, tag = 'input window, operand 5, single buffered']
    #allocation7 [shape = 'u8[512]{0}', space=vmem, size = 0x400, scoped, tag = 'input window, operand 6, single buffered']
    #allocation8 [shape = 's32[1]{0}', space=sflag, size = 0x4, scoped, tag = 'scoped memory for policy_forward.1']
    #allocation9 [shape = 'u8[512]{0}', space=vmem, size = 0x400, scoped, tag = 'input window, operand 7, single buffered']
    #allocation10 [shape = 'u8[512]{0}', space=vmem, size = 0x400, scoped, tag = 'input window, operand 8, single buffered']
    #allocation11 [shape = 's32[1]{0}', space=sflag, size = 0x4, scoped, tag = 'scoped memory for policy_forward.1']
    #allocation12 [shape = 'u8[512]{0}', space=vmem, size = 0x400, scoped, tag = 'input window, operand 10, single buffered']
    #allocation13 [shape = 'u8[512]{0}', space=vmem, size = 0x400, scoped, tag = 'input window, operand 11, single buffered']
    #allocation14 [shape = 's32[1]{0}', space=sflag, size = 0x4, scoped, tag = 'scoped memory for policy_forward.1']
    #allocation15 [shape = 'u8[512]{0}', space=vmem, size = 0x400, scoped, tag = 'input window, operand 12, single buffered']
    %20 = vsyncpa [#allocation3], 0
    %21 = vsyncpa [#allocation5], 0
    %22 = vsyncpa [#allocation8], 0
    %23 = vsyncpa [#allocation11], 0
    %24 = vsyncpa [#allocation14], 0
    // Predicated region
    $region2: #{policy_forward.1} parent=1 // pred_check
      _
    $region3: #{policy_forward.1} parent=1 // pred_check_branch
      %26 = sbr.rel (0) target = $region5
    $region4: #{policy_forward.1} parent=1 // pred_region
      _
    $region5: #{policy_forward.1} parent=1 // pred_fallthru
      _
    // Predicated region
    $region6: #{policy_forward.1} parent=1 // pred_check
      _
    $region7: #{policy_forward.1} parent=1 // pred_check_branch
      %28 = sbr.rel (0) target = $region9
    $region8: #{policy_forward.1} parent=1 // pred_region
      %30 = vsyncadd [#allocation3], 0
      %s31 = sshll.u32 %s1, 4
      %s32 = int_to_ptr.hbm [resolvable:$true] %s31
      %s33 = sshll.u32 [#allocation2], 4
      %s34 = int_to_ptr.vmem [resolvable:$true] %s33
      %39 = dma.hbm_to_vmem [thread:$0]  %s32, 512, %s34, [#allocation3], 128, 128, 8
    $region9: #{policy_forward.1} parent=1 // pred_fallthru
      _
    // Predicated region
    $region10: #{policy_forward.1} parent=1 // pred_check
      _
    $region11: #{policy_forward.1} parent=1 // pred_check_branch
      %41 = sbr.rel (0) target = $region13
    $region12: #{policy_forward.1} parent=1 // pred_region
      _
    $region13: #{policy_forward.1} parent=1 // pred_fallthru
      _
    // Predicated region
    $region14: #{policy_forward.1} parent=1 // pred_check
      _
    $region15: #{policy_forward.1} parent=1 // pred_check_branch
      %43 = sbr.rel (0) target = $region17
    $region16: #{policy_forward.1} parent=1 // pred_region
      _
    $region17: #{policy_forward.1} parent=1 // pred_fallthru
      _
    // Predicated region
    $region18: #{policy_forward.1} parent=1 // pred_check
      _
    $region19: #{policy_forward.1} parent=1 // pred_check_branch
      %45 = sbr.rel (0) target = $region21
    $region20: #{policy_forward.1} parent=1 // pred_region
      %47 = vsyncadd [#allocation5], 0
      %s49 = sshll.u32 %s4, 4
      %s50 = int_to_ptr.hbm [resolvable:$true] %s49
      %s51 = sshll.u32 [#allocation4], 4
      %s52 = int_to_ptr.vmem [resolvable:$true] %s51
      %54 = dma.hbm_to_vmem [thread:$0]  %s50, 32, %s52, [#allocation5]
    $region21: #{policy_forward.1} parent=1 // pred_fallthru
      _
    // Predicated region
    $region22: #{policy_forward.1} parent=1 // pred_check
      _
    $region23: #{policy_forward.1} parent=1 // pred_check_branch
      %56 = sbr.rel (0) target = $region25
    $region24: #{policy_forward.1} parent=1 // pred_region
      %58 = vsyncadd [#allocation5], 0
      %s59 = sshll.u32 %s5, 4
      %s60 = int_to_ptr.hbm [resolvable:$true] %s59
      %s61 = sshll.u32 [#allocation6], 4
      %s62 = int_to_ptr.vmem [resolvable:$true] %s61
      %67 = dma.hbm_to_vmem [thread:$0]  %s60, 2048, %s62, [#allocation5], 64, 64, 4
    $region25: #{policy_forward.1} parent=1 // pred_fallthru
      _
    // Predicated region
    $region26: #{policy_forward.1} parent=1 // pred_check
      _
    $region27: #{policy_forward.1} parent=1 // pred_check_branch
      %69 = sbr.rel (0) target = $region29
    $region28: #{policy_forward.1} parent=1 // pred_region
      %71 = vsyncadd [#allocation8], 0
      %s73 = sshll.u32 %s6, 4
      %s74 = int_to_ptr.hbm [resolvable:$true] %s73
      %s75 = sshll.u32 [#allocation7], 4
      %s76 = int_to_ptr.vmem [resolvable:$true] %s75
      %78 = dma.hbm_to_vmem [thread:$0]  %s74, 16, %s76, [#allocation8]
    $region29: #{policy_forward.1} parent=1 // pred_fallthru
      _
    // Predicated region
    $region30: #{policy_forward.1} parent=1 // pred_check
      _
    $region31: #{policy_forward.1} parent=1 // pred_check_branch
      %80 = sbr.rel (0) target = $region33
    $region32: #{policy_forward.1} parent=1 // pred_region
      %82 = vsyncadd [#allocation8], 0
      %s84 = sshll.u32 %s7, 4
      %s85 = int_to_ptr.hbm [resolvable:$true] %s84
      %s86 = sshll.u32 [#allocation9], 4
      %s87 = int_to_ptr.vmem [resolvable:$true] %s86
      %89 = dma.hbm_to_vmem [thread:$0]  %s85, 16, %s87, [#allocation8]
    $region33: #{policy_forward.1} parent=1 // pred_fallthru
      _
    // Predicated region
    $region34: #{policy_forward.1} parent=1 // pred_check
      _
    $region35: #{policy_forward.1} parent=1 // pred_check_branch
      %91 = sbr.rel (0) target = $region37
    $region36: #{policy_forward.1} parent=1 // pred_region
      %93 = vsyncadd [#allocation11], 0
      %s95 = sshll.u32 %s8, 4
      %s96 = int_to_ptr.hbm [resolvable:$true] %s95
      %s97 = sshll.u32 [#allocation10], 4
      %s98 = int_to_ptr.vmem [resolvable:$true] %s97
      %100 = dma.hbm_to_vmem [thread:$0]  %s96, 16, %s98, [#allocation11]
    $region37: #{policy_forward.1} parent=1 // pred_fallthru
      _
    // Predicated region
    $region38: #{policy_forward.1} parent=1 // pred_check
      _
    $region39: #{policy_forward.1} parent=1 // pred_check_branch
      %102 = sbr.rel (0) target = $region41
    $region40: #{policy_forward.1} parent=1 // pred_region
      _
    $region41: #{policy_forward.1} parent=1 // pred_fallthru
      _
    // Predicated region
    $region42: #{policy_forward.1} parent=1 // pred_check
      _
    $region43: #{policy_forward.1} parent=1 // pred_check_branch
      %104 = sbr.rel (0) target = $region45
    $region44: #{policy_forward.1} parent=1 // pred_region
      %106 = vsyncadd [#allocation11], 0
      %s108 = sshll.u32 %s10, 4
      %s109 = int_to_ptr.hbm [resolvable:$true] %s108
      %s110 = sshll.u32 [#allocation12], 4
      %s111 = int_to_ptr.vmem [resolvable:$true] %s110
      %113 = dma.hbm_to_vmem [thread:$0]  %s109, 16, %s111, [#allocation11]
    $region45: #{policy_forward.1} parent=1 // pred_fallthru
      _
    // Predicated region
    $region46: #{policy_forward.1} parent=1 // pred_check
      _
    $region47: #{policy_forward.1} parent=1 // pred_check_branch
      %115 = sbr.rel (0) target = $region49
    $region48: #{policy_forward.1} parent=1 // pred_region
      %117 = vsyncadd [#allocation14], 0
      %s119 = sshll.u32 %s11, 4
      %s120 = int_to_ptr.hbm [resolvable:$true] %s119
      %s121 = sshll.u32 [#allocation13], 4
      %s122 = int_to_ptr.vmem [resolvable:$true] %s121
      %124 = dma.hbm_to_vmem [thread:$0]  %s120, 16, %s122, [#allocation14]
    $region49: #{policy_forward.1} parent=1 // pred_fallthru
      _
    // Predicated region
    $region50: #{policy_forward.1} parent=1 // pred_check
      _
    $region51: #{policy_forward.1} parent=1 // pred_check_branch
      %126 = sbr.rel (0) target = $region53
    $region52: #{policy_forward.1} parent=1 // pred_region
      %128 = vsyncadd [#allocation14], 0
      %s130 = sshll.u32 %s12, 4
      %s131 = int_to_ptr.hbm [resolvable:$true] %s130
      %s132 = sshll.u32 [#allocation15], 4
      %s133 = int_to_ptr.vmem [resolvable:$true] %s132
      %135 = dma.hbm_to_vmem [thread:$0]  %s131, 16, %s133, [#allocation14]
    $region53: #{policy_forward.1} parent=1 // pred_fallthru
      _
    // Predicated region
    $region54: #{policy_forward.1} parent=1 // pred_check
      _
    $region55: #{policy_forward.1} parent=1 // pred_check_branch
      %137 = sbr.rel (0) target = $region57
    $region56: #{policy_forward.1} parent=1 // pred_region
      _
    $region57: #{policy_forward.1} parent=1 // pred_fallthru
      _
    // Predicated region
    $region58: #{policy_forward.1} parent=1 // pred_check
      _
    $region59: #{policy_forward.1} parent=1 // pred_check_branch
      %139 = sbr.rel (0) target = $region61
    $region60: #{policy_forward.1} parent=1 // pred_region
      _
    $region61: #{policy_forward.1} parent=1 // pred_fallthru
      _
    // Predicated region
    $region62: #{policy_forward.1} parent=1 // pred_check
      _
    $region63: #{policy_forward.1} parent=1 // pred_check_branch
      %141 = sbr.rel (0) target = $region65
    $region64: #{policy_forward.1} parent=1 // pred_region
      %143 = dma.done [#allocation3], 512
    $region65: #{policy_forward.1} parent=1 // pred_fallthru
      _
    // Predicated region
    $region66: #{policy_forward.1} parent=1 // pred_check
      _
    $region67: #{policy_forward.1} parent=1 // pred_check_branch
      %145 = sbr.rel (0) target = $region69
    $region68: #{policy_forward.1} parent=1 // pred_region
      %147 = dma.done [#allocation5], 32
    $region69: #{policy_forward.1} parent=1 // pred_fallthru
      _
    // Predicated region
    $region70: #{policy_forward.1} parent=1 // pred_check
      _
    $region71: #{policy_forward.1} parent=1 // pred_check_branch
      %149 = sbr.rel (0) target = $region73
    $region72: #{policy_forward.1} parent=1 // pred_region
      %151 = dma.done [#allocation5], 2048
    $region73: #{policy_forward.1} parent=1 // pred_fallthru
      _
    // Predicated region
    $region74: #{policy_forward.1} parent=1 // pred_check
      _
    $region75: #{policy_forward.1} parent=1 // pred_check_branch
      %153 = sbr.rel (0) target = $region77
    $region76: #{policy_forward.1} parent=1 // pred_region
      %155 = dma.done [#allocation8], 16
    $region77: #{policy_forward.1} parent=1 // pred_fallthru
      _
    // Predicated region
    $region78: #{policy_forward.1} parent=1 // pred_check
      _
    $region79: #{policy_forward.1} parent=1 // pred_check_branch
      %157 = sbr.rel (0) target = $region81
    $region80: #{policy_forward.1} parent=1 // pred_region
      %159 = dma.done [#allocation8], 16
    $region81: #{policy_forward.1} parent=1 // pred_fallthru
      _
    // Predicated region
    $region82: #{policy_forward.1} parent=1 // pred_check
      _
    $region83: #{policy_forward.1} parent=1 // pred_check_branch
      %161 = sbr.rel (0) target = $region85
    $region84: #{policy_forward.1} parent=1 // pred_region
      %163 = dma.done [#allocation11], 16
    $region85: #{policy_forward.1} parent=1 // pred_fallthru
      _
    // Predicated region
    $region86: #{policy_forward.1} parent=1 // pred_check
      _
    $region87: #{policy_forward.1} parent=1 // pred_check_branch
      %165 = sbr.rel (0) target = $region89
    $region88: #{policy_forward.1} parent=1 // pred_region
      %167 = dma.done [#allocation11], 16
    $region89: #{policy_forward.1} parent=1 // pred_fallthru
      _
    // Predicated region
    $region90: #{policy_forward.1} parent=1 // pred_check
      _
    $region91: #{policy_forward.1} parent=1 // pred_check_branch
      %169 = sbr.rel (0) target = $region93
    $region92: #{policy_forward.1} parent=1 // pred_region
      %171 = dma.done [#allocation14], 16
    $region93: #{policy_forward.1} parent=1 // pred_fallthru
      _
    // Predicated region
    $region94: #{policy_forward.1} parent=1 // pred_check
      _
    $region95: #{policy_forward.1} parent=1 // pred_check_branch
      %173 = sbr.rel (0) target = $region97
    $region96: #{policy_forward.1} parent=1 // pred_region
      %175 = dma.done [#allocation14], 16
    $region97: #{policy_forward.1} parent=1 // pred_fallthru
      _
    %v177 = vld [vmem:[%s0] sm:$0xff]
    %v178 = vpack.c.bf16 %v177, %v177
    %v179 = vld [vmem:[#allocation2] sm:$0xff]
    %v180 = vld [vmem:[#allocation2 + $0x8] sm:$0xff]
    %v181 = vld [vmem:[#allocation2 + $0x10] sm:$0xff]
    %v182 = vld [vmem:[#allocation2 + $0x18] sm:$0xff]
    %v183 = vld [vmem:[%s2] sm:$0x3]
    %v185 = vperm.slane %v183, 0
    %v186 = vperm.slane %v183, 1
    %v193 = vunpack.c.l.b16 %v179
    %v194 = vunpack.c.h.b16 %v179
    %v195 = vunpack.c.l.b16 %v180
    %v196 = vunpack.c.h.b16 %v180
    %v197 = vunpack.c.l.b16 %v181
    %v198 = vunpack.c.h.b16 %v181
    %v199 = vunpack.c.l.b16 %v182
    %v200 = vunpack.c.h.b16 %v182
    %v201 = vpack.c.b16 %v195, %v193
    %v202 = vpack.c.b16 %v196, %v194
    %v203 = vpack.c.b16 %v199, %v197
    %v204 = vpack.c.b16 %v200, %v198
    %vm209 = vcmask 261120
    %v211 = vsel %vm209, %v178, 0
    %213 = vmatpush.bf16.msra.mxu0 0
    %214 = vmatpush.bf16.msra.mxu0 0
    %215 = vmatpush.bf16.msra.mxu0 0
    %216 = vmatpush.bf16.msra.mxu0 0
    %217 = vmatpush.bf16.msra.mxu0 0
    %218 = vmatpush.bf16.msra.mxu0 0
    %219 = vmatpush.bf16.msra.mxu0 %v203
    %220 = vmatpush.bf16.msra.mxu0 %v201
    %221 = vmatmul.bf16.gmra.mxu0 %v211
    %v222 = vpop.f32.mrf.mxu0
    %v223 = vadd.f32 %v185, %v222
    %v224 = vpop.f32.mrf.mxu0
    %225 = vdwg.mxu0
    %226 = vmatpush.bf16.msra.mxu0 0
    %227 = vmatpush.bf16.msra.mxu0 0
    %228 = vmatpush.bf16.msra.mxu0 0
    %229 = vmatpush.bf16.msra.mxu0 0
    %230 = vmatpush.bf16.msra.mxu0 0
    %231 = vmatpush.bf16.msra.mxu0 0
    %232 = vmatpush.bf16.msra.mxu0 %v204
    %233 = vmatpush.bf16.msra.mxu0 %v202
    %234 = vmatmul.bf16.gmra.mxu0 %v211
    %v235 = vpop.f32.mrf.mxu0
    %v236 = vadd.f32 %v186, %v235
    %v237 = vpop.f32.mrf.mxu0
    %238 = vdwg.mxu0
    %v239 = vrot.slane %v223, 4
    %v240 = vadd.f32 %v223, %v239
    %v241 = vrot.slane %v240, 2
    %v242 = vadd.f32 %v240, %v241
    %v243 = vrot.slane %v242, 1
    %v244 = vadd.f32 %v242, %v243
    %v245 = vrot.slane %v236, 4
    %v246 = vadd.f32 %v236, %v245
    %v247 = vrot.slane %v246, 2
    %v248 = vadd.f32 %v246, %v247
    %v249 = vrot.slane %v248, 1
    %v250 = vadd.f32 %v248, %v249
    %v251 = vrcp.pop 8.0
    %v252 = vmul.f32 8.0, %v251
    %v253 = vsub.f32 1.0, %v252
    %v254 = vmul.f32 %v251, %v253
    %v255 = vadd.f32 %v251, %v254
    %vm256 = vweird.f32 %v251
    %v257 = vsel %vm256, %v251, %v255
    %v258 = vmul.f32 %v244, %v257
    %v259 = vmul.f32 %v250, %v257
    %v260 = vsub.f32 %v223, %v258
    %v261 = vsub.f32 %v236, %v259
    %v262 = vmul.f32 %v260, %v260
    %v263 = vmul.f32 %v261, %v261
    %v264 = vrot.slane %v262, 4
    %v265 = vadd.f32 %v262, %v264
    %v266 = vrot.slane %v265, 2
    %v267 = vadd.f32 %v265, %v266
    %v268 = vrot.slane %v267, 1
    %v269 = vadd.f32 %v267, %v268
    %v270 = vrot.slane %v263, 4
    %v271 = vadd.f32 %v263, %v270
    %v272 = vrot.slane %v271, 2
    %v273 = vadd.f32 %v271, %v272
    %v274 = vrot.slane %v273, 1
    %v275 = vadd.f32 %v273, %v274
    %v276 = vmul.f32 %v269, %v257
    %v277 = vmul.f32 %v275, %v257
    %v278 = vld [vmem:[%s3] sm:$0x3]
    %v279 = vadd.f32 %v276, 1e-05
    %v280 = vadd.f32 %v277, 1e-05
    %v281 = vrsqrt.pop %v279
    %v282 = vmul.f32 %v281, %v279
    %v283 = vmul.f32 %v282, %v281
    %v284 = vmul.f32 0.5, %v283
    %v285 = vsub.f32 1.5, %v284
    %v286 = vmul.f32 %v281, %v285
    %vm287 = vweird.f32 %v279
    %vm288 = vweird.f32 %v281
    %vm289 = vmor %vm287, %vm288
    %v290 = vsel %vm289, %v281, %v286
    %v291 = vrsqrt.pop %v280
    %v292 = vmul.f32 %v291, %v280
    %v293 = vmul.f32 %v292, %v291
    %v294 = vmul.f32 0.5, %v293
    %v295 = vsub.f32 1.5, %v294
    %v296 = vmul.f32 %v291, %v295
    %vm297 = vweird.f32 %v280
    %vm298 = vweird.f32 %v291
    %vm299 = vmor %vm297, %vm298
    %v300 = vsel %vm299, %v291, %v296
    %v303 = vrot.slane %v300, 7
    %vm304 = vcmask 1040384
    %v305 = vsel %vm304, %v290, %v303
    %v307 = vmul.f32 %v278, %v305
    %v308 = vld [vmem:[#allocation4] sm:$0x3]
    %v310 = vperm.slane %v307, 0
    %v311 = vperm.slane %v307, 1
    %v314 = vmul.f32 %v258, %v310
    %v315 = vmul.f32 %v259, %v311
    %v318 = vrot.slane %v315, 7
    %v319 = vsel %vm304, %v314, %v318
    %v321 = vsub.f32 %v308, %v319
    %v322 = vmul.f32 %v223, %v310
    %v323 = vmul.f32 %v236, %v311
    %v325 = vperm.slane %v321, 0
    %v326 = vperm.slane %v321, 1
    %v329 = vadd.f32 %v322, %v325
    %v330 = vadd.f32 %v323, %v326
    %v331 = vmax.f32 %v329, 0.0
    %v332 = vmax.f32 %v330, 0.0
    %v333 = vpack.c.bf16 %v331, %v331
    %v334 = vpack.c.bf16 %v332, %v332
    %v335 = vld [vmem:[#allocation6] sm:$0xf]
    %v336 = vld [vmem:[#allocation6 + $0x4] sm:$0xf]
    %v337 = vld [vmem:[#allocation6 + $0x8] sm:$0xf]
    %v338 = vld [vmem:[#allocation6 + $0xc] sm:$0xf]
    %v339 = vld [vmem:[#allocation6 + $0x10] sm:$0xf]
    %v340 = vld [vmem:[#allocation6 + $0x14] sm:$0xf]
    %v341 = vld [vmem:[#allocation6 + $0x18] sm:$0xf]
    %v342 = vld [vmem:[#allocation6 + $0x1c] sm:$0xf]
    %v343 = vld [vmem:[#allocation6 + $0x20] sm:$0xf]
    %v344 = vld [vmem:[#allocation6 + $0x24] sm:$0xf]
    %v345 = vld [vmem:[#allocation6 + $0x28] sm:$0xf]
    %v346 = vld [vmem:[#allocation6 + $0x2c] sm:$0xf]
    %v347 = vld [vmem:[#allocation6 + $0x30] sm:$0xf]
    %v348 = vld [vmem:[#allocation6 + $0x34] sm:$0xf]
    %v349 = vld [vmem:[#allocation6 + $0x38] sm:$0xf]
    %v350 = vld [vmem:[#allocation6 + $0x3c] sm:$0xf]
    %v351 = vld [vmem:[#allocation6 + $0x40] sm:$0xf]
    %v352 = vld [vmem:[#allocation6 + $0x44] sm:$0xf]
    %v353 = vld [vmem:[#allocation6 + $0x48] sm:$0xf]
    %v354 = vld [vmem:[#allocation6 + $0x4c] sm:$0xf]
    %v355 = vld [vmem:[#allocation6 + $0x50] sm:$0xf]
    %v356 = vld [vmem:[#allocation6 + $0x54] sm:$0xf]
    %v357 = vld [vmem:[#allocation6 + $0x58] sm:$0xf]
    %v358 = vld [vmem:[#allocation6 + $0x5c] sm:$0xf]
    %v359 = vld [vmem:[#allocation6 + $0x60] sm:$0xf]
    %v360 = vld [vmem:[#allocation6 + $0x64] sm:$0xf]
    %v361 = vld [vmem:[#allocation6 + $0x68] sm:$0xf]
    %v362 = vld [vmem:[#allocation6 + $0x6c] sm:$0xf]
    %v363 = vld [vmem:[#allocation6 + $0x70] sm:$0xf]
    %v364 = vld [vmem:[#allocation6 + $0x74] sm:$0xf]
    %v365 = vld [vmem:[#allocation6 + $0x78] sm:$0xf]
    %v366 = vld [vmem:[#allocation6 + $0x7c] sm:$0xf]
    %v367 = vld [vmem:[#allocation7] sm:$0x1]
    %v369 = vperm.slane %v367, 0
    %v403 = vunpack.c.l.b16 %v335
    %v404 = vunpack.c.l.b16 %v336
    %v405 = vunpack.c.l.b16 %v337
    %v406 = vunpack.c.l.b16 %v338
    %v407 = vunpack.c.l.b16 %v339
    %v408 = vunpack.c.l.b16 %v340
    %v409 = vunpack.c.l.b16 %v341
    %v410 = vunpack.c.l.b16 %v342
    %v411 = vunpack.c.l.b16 %v343
    %v412 = vunpack.c.l.b16 %v344
    %v413 = vunpack.c.l.b16 %v345
    %v414 = vunpack.c.l.b16 %v346
    %v415 = vunpack.c.l.b16 %v347
    %v416 = vunpack.c.l.b16 %v348
    %v417 = vunpack.c.l.b16 %v349
    %v418 = vunpack.c.l.b16 %v350
    %v419 = vunpack.c.l.b16 %v351
    %v420 = vunpack.c.l.b16 %v352
    %v421 = vunpack.c.l.b16 %v353
    %v422 = vunpack.c.l.b16 %v354
    %v423 = vunpack.c.l.b16 %v355
    %v424 = vunpack.c.l.b16 %v356
    %v425 = vunpack.c.l.b16 %v357
    %v426 = vunpack.c.l.b16 %v358
    %v427 = vunpack.c.l.b16 %v359
    %v428 = vunpack.c.l.b16 %v360
    %v429 = vunpack.c.l.b16 %v361
    %v430 = vunpack.c.l.b16 %v362
    %v431 = vunpack.c.l.b16 %v363
    %v432 = vunpack.c.l.b16 %v364
    %v433 = vunpack.c.l.b16 %v365
    %v434 = vunpack.c.l.b16 %v366
    %v435 = vpack.c.b16 %v404, %v403
    %v436 = vpack.c.b16 %v406, %v405
    %v437 = vpack.c.b16 %v408, %v407
    %v438 = vpack.c.b16 %v410, %v409
    %v439 = vpack.c.b16 %v412, %v411
    %v440 = vpack.c.b16 %v414, %v413
    %v441 = vpack.c.b16 %v416, %v415
    %v442 = vpack.c.b16 %v418, %v417
    %v443 = vpack.c.b16 %v420, %v419
    %v444 = vpack.c.b16 %v422, %v421
    %v445 = vpack.c.b16 %v424, %v423
    %v446 = vpack.c.b16 %v426, %v425
    %v447 = vpack.c.b16 %v428, %v427
    %v448 = vpack.c.b16 %v430, %v429
    %v449 = vpack.c.b16 %v432, %v431
    %v450 = vpack.c.b16 %v434, %v433
    %467 = vmatpush.bf16.msra.mxu0 %v442
    %468 = vmatpush.bf16.msra.mxu0 %v441
    %469 = vmatpush.bf16.msra.mxu0 %v440
    %470 = vmatpush.bf16.msra.mxu0 %v439
    %471 = vmatpush.bf16.msra.mxu0 %v438
    %472 = vmatpush.bf16.msra.mxu0 %v437
    %473 = vmatpush.bf16.msra.mxu0 %v436
    %474 = vmatpush.bf16.msra.mxu0 %v435
    %475 = vmatmul.bf16.gmra.mxu0 %v333
    %v476 = vpop.f32.mrf.mxu0
    %v477 = vadd.f32 %v369, %v476
    %v478 = vpop.f32.mrf.mxu0
    %479 = vdwg.mxu0
    %480 = vmatpush.bf16.msra.mxu0 %v450
    %481 = vmatpush.bf16.msra.mxu0 %v449
    %482 = vmatpush.bf16.msra.mxu0 %v448
    %483 = vmatpush.bf16.msra.mxu0 %v447
    %484 = vmatpush.bf16.msra.mxu0 %v446
    %485 = vmatpush.bf16.msra.mxu0 %v445
    %486 = vmatpush.bf16.msra.mxu0 %v444
    %487 = vmatpush.bf16.msra.mxu0 %v443
    %488 = vmatmul.bf16.gmra.mxu0 %v334
    %v489 = vpop.f32.mrf.mxu0
    %v490 = vadd.f32 %v477, %v489
    %v491 = vpop.f32.mrf.mxu0
    %492 = vdwg.mxu0
    %v493 = vrot.slane %v490, 4
    %v494 = vadd.f32 %v490, %v493
    %v495 = vrot.slane %v494, 2
    %v496 = vadd.f32 %v494, %v495
    %v497 = vrot.slane %v496, 1
    %v498 = vadd.f32 %v496, %v497
    %v499 = vmul.f32 %v498, %v257
    %v500 = vsub.f32 %v490, %v499
    %v501 = vmul.f32 %v500, %v500
    %v502 = vrot.slane %v501, 4
    %v503 = vadd.f32 %v501, %v502
    %v504 = vrot.slane %v503, 2
    %v505 = vadd.f32 %v503, %v504
    %v506 = vrot.slane %v505, 1
    %v507 = vadd.f32 %v505, %v506
    %v508 = vmul.f32 %v507, %v257
    %v509 = vld [vmem:[#allocation9] sm:$0x1]
    %v510 = vadd.f32 %v508, 1e-05
    %v511 = vrsqrt.pop %v510
    %v512 = vmul.f32 %v511, %v510
    %v513 = vmul.f32 %v512, %v511
    %v514 = vmul.f32 0.5, %v513
    %v515 = vsub.f32 1.5, %v514
    %v516 = vmul.f32 %v511, %v515
    %vm517 = vweird.f32 %v510
    %vm518 = vweird.f32 %v511
    %vm519 = vmor %vm517, %vm518
    %v520 = vsel %vm519, %v511, %v516
    %v521 = vmul.f32 %v509, %v520
    %v522 = vld [vmem:[#allocation10] sm:$0x1]
    %v523 = vmul.f32 %v499, %v521
    %v524 = vsub.f32 %v522, %v523
    %v526 = vperm.slane %v521, 0
    %v528 = vmul.f32 %v490, %v526
    %v530 = vperm.slane %v524, 0
    %v532 = vadd.f32 %v528, %v530
    %v533 = vmax.f32 %v532, 0.0
    %v534 = vpack.c.bf16 %v533, %v533
    %v535 = vld [vmem:[%s9] sm:$0xf]
    %v536 = vld [vmem:[%s9 + $0x4] sm:$0xf]
    %v537 = vld [vmem:[%s9 + $0x8] sm:$0xf]
    %v538 = vld [vmem:[%s9 + $0xc] sm:$0xf]
    %v539 = vld [vmem:[%s9 + $0x10] sm:$0xf]
    %v540 = vld [vmem:[%s9 + $0x14] sm:$0xf]
    %v541 = vld [vmem:[%s9 + $0x18] sm:$0xf]
    %v542 = vld [vmem:[%s9 + $0x1c] sm:$0xf]
    %v543 = vld [vmem:[%s9 + $0x20] sm:$0xf]
    %v544 = vld [vmem:[%s9 + $0x24] sm:$0xf]
    %v545 = vld [vmem:[%s9 + $0x28] sm:$0xf]
    %v546 = vld [vmem:[%s9 + $0x2c] sm:$0xf]
    %v547 = vld [vmem:[%s9 + $0x30] sm:$0xf]
    %v548 = vld [vmem:[%s9 + $0x34] sm:$0xf]
    %v549 = vld [vmem:[%s9 + $0x38] sm:$0xf]
    %v550 = vld [vmem:[%s9 + $0x3c] sm:$0xf]
    %v551 = vld [vmem:[#allocation12] sm:$0x1]
    %v553 = vperm.slane %v551, 0
    %v571 = vunpack.c.l.b16 %v535
    %v572 = vunpack.c.l.b16 %v536
    %v573 = vunpack.c.l.b16 %v537
    %v574 = vunpack.c.l.b16 %v538
    %v575 = vunpack.c.l.b16 %v539
    %v576 = vunpack.c.l.b16 %v540
    %v577 = vunpack.c.l.b16 %v541
    %v578 = vunpack.c.l.b16 %v542
    %v579 = vunpack.c.l.b16 %v543
    %v580 = vunpack.c.l.b16 %v544
    %v581 = vunpack.c.l.b16 %v545
    %v582 = vunpack.c.l.b16 %v546
    %v583 = vunpack.c.l.b16 %v547
    %v584 = vunpack.c.l.b16 %v548
    %v585 = vunpack.c.l.b16 %v549
    %v586 = vunpack.c.l.b16 %v550
    %v587 = vpack.c.b16 %v572, %v571
    %v588 = vpack.c.b16 %v574, %v573
    %v589 = vpack.c.b16 %v576, %v575
    %v590 = vpack.c.b16 %v578, %v577
    %v591 = vpack.c.b16 %v580, %v579
    %v592 = vpack.c.b16 %v582, %v581
    %v593 = vpack.c.b16 %v584, %v583
    %v594 = vpack.c.b16 %v586, %v585
    %603 = vmatpush.bf16.msra.mxu0 %v594
    %604 = vmatpush.bf16.msra.mxu0 %v593
    %605 = vmatpush.bf16.msra.mxu0 %v592
    %606 = vmatpush.bf16.msra.mxu0 %v591
    %607 = vmatpush.bf16.msra.mxu0 %v590
    %608 = vmatpush.bf16.msra.mxu0 %v589
    %609 = vmatpush.bf16.msra.mxu0 %v588
    %610 = vmatpush.bf16.msra.mxu0 %v587
    %611 = vmatmul.bf16.gmra.mxu0 %v534
    %v612 = vpop.f32.mrf.mxu0
    %v613 = vadd.f32 %v553, %v612
    %v614 = vpop.f32.mrf.mxu0
    %615 = vdwg.mxu0
    %v616 = vadd.f32 %v533, %v613
    %617 = vadd.xlane.f32.xlu0 %v616
    %v618 = vpop.xlane.xlu0 %617
    %v619 = vrcp.pop 128.0
    %v620 = vmul.f32 128.0, %v619
    %v621 = vsub.f32 1.0, %v620
    %v622 = vmul.f32 %v619, %v621
    %v623 = vadd.f32 %v619, %v622
    %vm624 = vweird.f32 %v619
    %v625 = vsel %vm624, %v619, %v623
    %v626 = vmul.f32 %v618, %v625
    %v627 = vsub.f32 %v616, %v626
    %v628 = vmul.f32 %v627, %v627
    %629 = vadd.xlane.f32.xlu0 %v628
    %v630 = vpop.xlane.xlu0 %629
    %v631 = vmul.f32 %v630, %v625
    %v632 = vadd.f32 %v631, 1e-05
    %v633 = vrsqrt.pop %v632
    %v634 = vmul.f32 %v633, %v632
    %v635 = vmul.f32 %v634, %v633
    %v636 = vmul.f32 0.5, %v635
    %v637 = vsub.f32 1.5, %v636
    %v638 = vmul.f32 %v633, %v637
    %vm639 = vweird.f32 %v632
    %vm640 = vweird.f32 %v633
    %vm641 = vmor %vm639, %vm640
    %v642 = vsel %vm641, %v633, %v638
    %v643 = vmul.f32 %v627, %v642
    %v644 = vld [vmem:[#allocation13] sm:$0x1]
    %v646 = vperm.slane %v644, 0
    %v648 = vmul.f32 %v643, %v646
    %v649 = vld [vmem:[#allocation15] sm:$0x1]
    %v651 = vperm.slane %v649, 0
    %v653 = vadd.f32 %v648, %v651
    %v654 = vpack.c.bf16 %v653, %v653
    %v655 = vld [vmem:[%s13] sm:$0xf]
    %v656 = vld [vmem:[%s13 + $0x4] sm:$0xf]
    %v657 = vld [vmem:[%s13 + $0x8] sm:$0xf]
    %v658 = vld [vmem:[%s13 + $0xc] sm:$0xf]
    %v659 = vld [vmem:[%s13 + $0x10] sm:$0xf]
    %v660 = vld [vmem:[%s13 + $0x14] sm:$0xf]
    %v661 = vld [vmem:[%s13 + $0x18] sm:$0xf]
    %v662 = vld [vmem:[%s13 + $0x1c] sm:$0xf]
    %v663 = vld [vmem:[%s13 + $0x20] sm:$0xf]
    %v664 = vld [vmem:[%s13 + $0x24] sm:$0xf]
    %v665 = vld [vmem:[%s13 + $0x28] sm:$0xf]
    %v666 = vld [vmem:[%s13 + $0x2c] sm:$0xf]
    %v667 = vld [vmem:[%s13 + $0x30] sm:$0xf]
    %v668 = vld [vmem:[%s13 + $0x34] sm:$0xf]
    %v669 = vld [vmem:[%s13 + $0x38] sm:$0xf]
    %v670 = vld [vmem:[%s13 + $0x3c] sm:$0xf]
    %v671 = vld [vmem:[%s14] sm:$0x1]
    %v673 = vperm.slane %v671, 0
    %v691 = vunpack.c.l.b16 %v655
    %v692 = vunpack.c.l.b16 %v656
    %v693 = vunpack.c.l.b16 %v657
    %v694 = vunpack.c.l.b16 %v658
    %v695 = vunpack.c.l.b16 %v659
    %v696 = vunpack.c.l.b16 %v660
    %v697 = vunpack.c.l.b16 %v661
    %v698 = vunpack.c.l.b16 %v662
    %v699 = vunpack.c.l.b16 %v663
    %v700 = vunpack.c.l.b16 %v664
    %v701 = vunpack.c.l.b16 %v665
    %v702 = vunpack.c.l.b16 %v666
    %v703 = vunpack.c.l.b16 %v667
    %v704 = vunpack.c.l.b16 %v668
    %v705 = vunpack.c.l.b16 %v669
    %v706 = vunpack.c.l.b16 %v670
    %v707 = vpack.c.b16 %v692, %v691
    %v708 = vpack.c.b16 %v694, %v693
    %v709 = vpack.c.b16 %v696, %v695
    %v710 = vpack.c.b16 %v698, %v697
    %v711 = vpack.c.b16 %v700, %v699
    %v712 = vpack.c.b16 %v702, %v701
    %v713 = vpack.c.b16 %v704, %v703
    %v714 = vpack.c.b16 %v706, %v705
    %723 = vmatpush.bf16.msra.mxu0 %v714
    %724 = vmatpush.bf16.msra.mxu0 %v713
    %725 = vmatpush.bf16.msra.mxu0 %v712
    %726 = vmatpush.bf16.msra.mxu0 %v711
    %727 = vmatpush.bf16.msra.mxu0 %v710
    %728 = vmatpush.bf16.msra.mxu0 %v709
    %729 = vmatpush.bf16.msra.mxu0 %v708
    %730 = vmatpush.bf16.msra.mxu0 %v707
    %731 = vmatmul.bf16.gmra.mxu0 %v654
    %v732 = vpop.f32.mrf.mxu0
    %v733 = vadd.f32 %v673, %v732
    %v734 = vpop.f32.mrf.mxu0
    %735 = vdwg.mxu0
    %v736 = vlaneseq
    %v737 = vand.u32 %v736, 127
    %vm738 = vcmp.ge.s32.totalorder %v737, 8
    %v739 = vmax.f32 %v733, -20.0
    %v740 = vmin.f32 %v739, 2.0
    %v741 = vsel %vm738, %v740, %v733
    %vm742 = vcmask 130048
    %743 = vst.msk [vmem:[%s15] sm:$0xff] %vm742, %v741
    // Predicated region
    $region98: #{policy_forward.1} parent=1 // pred_check
      _
    $region99: #{policy_forward.1} parent=1 // pred_check_branch
      %745 = sbr.rel (0) target = $region101
    $region100: #{policy_forward.1} parent=1 // pred_region
      _
    $region101: #{policy_forward.1} parent=1 // pred_fallthru
      _
    // Predicated region
    $region102: #{policy_forward.1} parent=1 // pred_check
      _
    $region103: #{policy_forward.1} parent=1 // pred_check_branch
      %747 = sbr.rel (0) target = $region105
    $region104: #{policy_forward.1} parent=1 // pred_region
      _
    $region105: #{policy_forward.1} parent=1 // pred_fallthru
      _
    %748 = vsyncpa [#allocation3], 1
    %749 = vsyncpa [#allocation5], 1
    %750 = vsyncpa [#allocation8], 1
    %751 = vsyncpa [#allocation11], 1
    %752 = vsyncpa [#allocation14], 1

</llo_original>
